<compile_context>
chip_gen: v5e
topology: v5e:2x2
jax: 0.10.0
libtpu: 0.0.40
codegen_flags: <defaults>
</compile_context>

<pallas_src>
import jax
import jax.numpy as jnp
from jax import lax
from jax.experimental import pallas as pl
from jax.experimental.pallas import tpu as pltpu


def _cdiv(a, b):
    return -(-a // b)


def _make_kernel(C, P, Hp3, Wp3, Hout, LW):
    """Build the stencil kernel for a given packing geometry (all Python ints)."""

    def kernel(xp_ref, w1c0_ref, w1c1_ref, w2a_ref, consts_ref, o_ref, f_ref):
        # xp_ref:    (1, C, Hp3, LW) VMEM  packed input: image p's pixel (h, w) of channel
        #                                  c sits at [0, c, 3+h, p*Wp3 + 3 + w]; 0 elsewhere.
        # w1c0_ref:  (C,)            SMEM  conv1 weights, out-channel 0
        # w1c1_ref:  (C,)            SMEM  w2b * conv1 weights, out-channel 1 (conv2b folded)
        # w2a_ref:   (9,)            SMEM  conv2a 3x3 weights, row-major
        # consts_ref:(2,)            SMEM  [b1[0], b2a + w2b*b1[1] + b2b]
        # o_ref:     (1, Hout, LW)   VMEM  lane-packed output slab
        # f_ref:     (Hp3, LW)       VMEM scratch: conv2a input field
        b10 = consts_ref[0]
        cb = consts_ref[1]

        # conv1 out-channel 0 (linear part), dense FMAs over the whole packed field.
        lin0 = w1c0_ref[0] * xp_ref[0, 0]
        for c in range(1, C):
            lin0 = lin0 + w1c0_ref[c] * xp_ref[0, c]

        # Domain mask: rows/lanes covered by conv1's output (data + b1[0] ring).
        # Outside it (conv2a's zero padding, inter-image gaps, tail lanes) the field
        # is 0.  Built once from 2-D iotas; P is a static Python int (no modulo).
        rows = lax.broadcasted_iota(jnp.int32, (Hp3, LW), 0)
        lanes = lax.broadcasted_iota(jnp.int32, (Hp3, LW), 1)
        in_row = jnp.logical_and(rows >= 1, rows <= Hp3 - 2)
        in_lane = jnp.logical_and(lanes >= 1, lanes <= Wp3 - 2)
        for p in range(1, P):
            lo = p * Wp3 + 1
            hi = p * Wp3 + Wp3 - 2
            in_lane = jnp.logical_or(
                in_lane, jnp.logical_and(lanes >= lo, lanes <= hi))
        dom = jnp.logical_and(in_row, in_lane)

        # conv2a input field: ONE aligned full-block store.  lin0 is already zero
        # outside the data footprint, so the where() adds the b1[0] ring for free.
        f_ref[...] = jnp.where(dom, lin0 + b10, 0.0)

        # Folded conv2b linear term: only needed at field rows [1, 1+Hout), so read the
        # packed input at a +1 row offset (no register slicing, no extra scratch).
        lin1 = w1c1_ref[0] * xp_ref[0, 0, 1:1 + Hout, :]
        for c in range(1, C):
            lin1 = lin1 + w1c1_ref[c] * xp_ref[0, c, 1:1 + Hout, :]

        # 3x3 stencil: three sublane-offset row taps, column combines on the VPU, and
        # the +1/+2 column offsets via lane rolls (XLU).  Rolls never leak a neighbour
        # image's data into valid output columns: each image ends with 2 ring + 1 zero
        # columns inside its own Wp3-lane span.
        r0 = f_ref[0:Hout, :]
        r1 = f_ref[1:1 + Hout, :]
        r2 = f_ref[2:2 + Hout, :]
        g0 = w2a_ref[0] * r0 + w2a_ref[3] * r1 + w2a_ref[6] * r2
        g1 = w2a_ref[1] * r0 + w2a_ref[4] * r1 + w2a_ref[7] * r2
        g2 = w2a_ref[2] * r0 + w2a_ref[5] * r1 + w2a_ref[8] * r2
        conv = (g0 + pltpu.roll(g1, LW - 1, axis=1)
                + pltpu.roll(g2, LW - 2, axis=1))

        # conv2b term sits at field column (l+1) relative to output lane l: one lane roll.
        add_b = pltpu.roll(lin1, LW - 1, axis=1)

        o_ref[0] = jnp.tanh(conv + add_b + cb)

    return kernel


def _model_tanh_forward(x, w1_full, b1, w2a_full, b2a, w2b_full, b2b):
    """x: (N, 4, H, W) float32. Returns (N, 1, H+4, W+4) float32."""
    N, C, H, W = x.shape
    Hout, Wout = H + 4, W + 4           # conv1 padding=2 grows spatial dims by 4
    Hp3, Wp3 = H + 6, W + 6             # + 1-px zero ring for conv2a's padding=1
    LW = ((Wp3 + 127) // 128) * 128     # lane width of the packed field (>= 128)

    # Fold conv2b (1x1) into conv1's channel-1 weights and a single bias constant.
    w2b = w2b_full[0, 0, 0, 0]
    w1c0 = w1_full[0, :, 0, 0]                       # (4,)
    w1c1 = w2b * w1_full[1, :, 0, 0]                 # (4,)
    w2a9 = w2a_full[0, 0].reshape(9)                 # (9,) input-channel 0, row-major
    consts = jnp.stack([b1[0], b2a[0] + w2b * b1[1] + b2b[0]])

    # Packing geometry: P images share the 128 lanes of one field group; one group per
    # grid step keeps the per-step working set at ~70 KB while the grid scales with N.
    # Guarantee G >= 2 whenever N >= 2 so both v7x TensorCores get work (this trades a
    # little lane density only when N < 2 * P_max; free on single-TC v5e/v6e grids >= 2).
    P_max = max(1, LW // Wp3)
    P = min(P_max, N)
    G = _cdiv(N, P)
    if N >= 2 and G < 2:
        P = _cdiv(N, 2)
        G = _cdiv(N, P)
    Npad = G * P

    # Wrapper-side layout plumbing (XLA): pack images along lanes with their 3-px field
    # offset so the kernel only does dense FMAs + masks.
    xb = x
    if Npad != N:
        xb = jnp.pad(xb, ((0, Npad - N), (0, 0), (0, 0), (0, 0)))
    xb = xb.reshape(G, P, C, H, W)
    xb = jnp.pad(xb, ((0, 0), (0, 0), (0, 0), (0, 0), (3, 3)))       # W  -> Wp3
    xb = jnp.transpose(xb, (0, 2, 3, 1, 4))                           # (G, C, H, P, Wp3)
    xb = xb.reshape(G, C, H, P * Wp3)
    xb = jnp.pad(xb, ((0, 0), (0, 0), (3, 3), (0, LW - P * Wp3)))     # H -> Hp3, lanes -> LW

    kernel = _make_kernel(C, P, Hp3, Wp3, Hout, LW)
    out_slab = pl.pallas_call(
        kernel,
        out_shape=jax.ShapeDtypeStruct((G, Hout, LW), jnp.float32),
        grid=(G,),
        in_specs=[
            pl.BlockSpec((1, C, Hp3, LW), lambda g: (g, 0, 0, 0)),
            pl.BlockSpec(memory_space=pltpu.SMEM),
            pl.BlockSpec(memory_space=pltpu.SMEM),
            pl.BlockSpec(memory_space=pltpu.SMEM),
            pl.BlockSpec(memory_space=pltpu.SMEM),
        ],
        out_specs=pl.BlockSpec((1, Hout, LW), lambda g: (g, 0, 0)),
        scratch_shapes=[pltpu.VMEM((Hp3, LW), jnp.float32)],
        compiler_params=pltpu.CompilerParams(
            dimension_semantics=("parallel",),
            vmem_limit_bytes=32 * 1024 * 1024),
    )(xb, w1c0, w1c1, w2a9, consts)

    # Unpack the lane-packed slab back to NCHW (wrapper-side layout plumbing).
    o = out_slab[:, :, :P * Wp3].reshape(G, Hout, P, Wp3)
    o = jnp.transpose(o, (0, 2, 1, 3)).reshape(G * P, Hout, Wp3)
    return o[:N, :, :Wout][:, None, :, :]


model_tanh_forward = jax.jit(_model_tanh_forward)


def reference_forward(x, w1_full, b1, w2a_full, b2a, w2b_full, b2b):
    dn = ("NCHW", "OIHW", "NCHW")
    v1 = lax.conv_general_dilated(
        x, w1_full, window_strides=(1, 1), padding=((2, 2), (2, 2)),
        rhs_dilation=(2, 2), dimension_numbers=dn,
    ) + b1.reshape(1, 2, 1, 1)
    v2a = lax.conv_general_dilated(
        v1[:, 0:1], w2a_full[:, 0:1], window_strides=(1, 1),
        padding=((1, 1), (1, 1)), dimension_numbers=dn,
    ) + b2a.reshape(1, 1, 1, 1)
    v2b = lax.conv_general_dilated(
        v1[:, 1:2], w2b_full[:, 0:1], window_strides=(1, 1),
        padding=((0, 0), (0, 0)), dimension_numbers=dn,
    ) + b2b.reshape(1, 1, 1, 1)
    return jnp.tanh(v2a + v2b)


if __name__ == "__main__":
    key = jax.random.PRNGKey(0)
    ks = jax.random.split(key, 7)

    # Parameters with the shapes declared in __init__ (deterministic init).
    w1_full = 0.5 * jax.random.normal(ks[0], (2, 4, 1, 1), jnp.float32)
    b1 = 0.1 * jax.random.normal(ks[1], (2,), jnp.float32)
    w2a_full = 0.5 * jax.random.normal(ks[2], (1, 2, 3, 3), jnp.float32)
    b2a = 0.1 * jax.random.normal(ks[3], (1,), jnp.float32)
    w2b_full = 0.5 * jax.random.normal(ks[4], (1, 2, 1, 1), jnp.float32)
    b2b = 0.1 * jax.random.normal(ks[5], (1,), jnp.float32)

    # Example input (small shapes consistent with the module: 4 in-channels).
    x = jax.random.normal(ks[6], (2, 4, 16, 16), jnp.float32)

    out = model_tanh_forward(x, w1_full, b1, w2a_full, b2a, w2b_full, b2b)
    out = jax.block_until_ready(out)

    ref = reference_forward(x, w1_full, b1, w2a_full, b2a, w2b_full, b2b)
    ref = jax.block_until_ready(ref)

    assert out.shape == ref.shape, (out.shape, ref.shape)
    if not jnp.allclose(out, ref, atol=2e-5, rtol=1e-5):
        raise AssertionError("Pallas kernel mismatch vs reference conv")

    print("KERNEL_OK")
</pallas_src>

<mosaic_0001>
module attributes {stable_mosaic.version = 11 : i64} {
  func.func @kernel(%arg0: i32, %arg1: memref<1x4x22x128xf32, #tpu.memory_space<vmem>>, %arg2: memref<4xf32, #tpu.memory_space<smem>>, %arg3: memref<4xf32, #tpu.memory_space<smem>>, %arg4: memref<9xf32, #tpu.memory_space<smem>>, %arg5: memref<2xf32, #tpu.memory_space<smem>>, %arg6: memref<1x20x128xf32, #tpu.memory_space<vmem>>, %arg7: memref<22x128xf32, #tpu.memory_space<vmem>>) attributes {dimension_semantics = [#tpu.dimension_semantics<parallel>], iteration_bounds = array<i64: 2>, scalar_prefetch = 0 : i64, scratch_operands = 1 : i64, tpu.core_type = #tpu.core_type<tc>, window_params = [{transform_indices = @transform_0, window_bounds = array<i64: 1, 4, 22, 128>}, {transform_indices = @transform_1, window_bounds = array<i64: 4>}, {transform_indices = @transform_2, window_bounds = array<i64: 4>}, {transform_indices = @transform_3, window_bounds = array<i64: 9>}, {transform_indices = @transform_4, window_bounds = array<i64: 2>}, {transform_indices = @transform_5, window_bounds = array<i64: 1, 20, 128>}]} {
    %c0 = arith.constant 0 : index
    %0 = memref.load %arg5[%c0] : memref<2xf32, #tpu.memory_space<smem>>
    %c1 = arith.constant 1 : index
    %1 = memref.load %arg5[%c1] : memref<2xf32, #tpu.memory_space<smem>>
    %c0_0 = arith.constant 0 : index
    %2 = memref.load %arg2[%c0_0] : memref<4xf32, #tpu.memory_space<smem>>
    %c0_1 = arith.constant 0 : index
    %c0_2 = arith.constant 0 : index
    %c0_3 = arith.constant 0 : index
    %c0_4 = arith.constant 0 : index
    %3 = vector.load %arg1[%c0_1, %c0_2, %c0_3, %c0_4] : memref<1x4x22x128xf32, #tpu.memory_space<vmem>>, vector<1x1x22x128xf32>
    %4 = vector.shape_cast %3 : vector<1x1x22x128xf32> to vector<22x128xf32>
    %5 = vector.broadcast %2 : f32 to vector<22x128xf32>
    %6 = arith.mulf %5, %4 : vector<22x128xf32>
    %c1_5 = arith.constant 1 : index
    %7 = memref.load %arg2[%c1_5] : memref<4xf32, #tpu.memory_space<smem>>
    %c0_6 = arith.constant 0 : index
    %c1_7 = arith.constant 1 : index
    %c0_8 = arith.constant 0 : index
    %c0_9 = arith.constant 0 : index
    %8 = vector.load %arg1[%c0_6, %c1_7, %c0_8, %c0_9] : memref<1x4x22x128xf32, #tpu.memory_space<vmem>>, vector<1x1x22x128xf32>
    %9 = vector.shape_cast %8 : vector<1x1x22x128xf32> to vector<22x128xf32>
    %10 = vector.broadcast %7 : f32 to vector<22x128xf32>
    %11 = arith.mulf %10, %9 : vector<22x128xf32>
    %12 = arith.addf %6, %11 : vector<22x128xf32>
    %c2 = arith.constant 2 : index
    %13 = memref.load %arg2[%c2] : memref<4xf32, #tpu.memory_space<smem>>
    %c0_10 = arith.constant 0 : index
    %c2_11 = arith.constant 2 : index
    %c0_12 = arith.constant 0 : index
    %c0_13 = arith.constant 0 : index
    %14 = vector.load %arg1[%c0_10, %c2_11, %c0_12, %c0_13] : memref<1x4x22x128xf32, #tpu.memory_space<vmem>>, vector<1x1x22x128xf32>
    %15 = vector.shape_cast %14 : vector<1x1x22x128xf32> to vector<22x128xf32>
    %16 = vector.broadcast %13 : f32 to vector<22x128xf32>
    %17 = arith.mulf %16, %15 : vector<22x128xf32>
    %18 = arith.addf %12, %17 : vector<22x128xf32>
    %c3 = arith.constant 3 : index
    %19 = memref.load %arg2[%c3] : memref<4xf32, #tpu.memory_space<smem>>
    %c0_14 = arith.constant 0 : index
    %c3_15 = arith.constant 3 : index
    %c0_16 = arith.constant 0 : index
    %c0_17 = arith.constant 0 : index
    %20 = vector.load %arg1[%c0_14, %c3_15, %c0_16, %c0_17] : memref<1x4x22x128xf32, #tpu.memory_space<vmem>>, vector<1x1x22x128xf32>
    %21 = vector.shape_cast %20 : vector<1x1x22x128xf32> to vector<22x128xf32>
    %22 = vector.broadcast %19 : f32 to vector<22x128xf32>
    %23 = arith.mulf %22, %21 : vector<22x128xf32>
    %24 = arith.addf %18, %23 : vector<22x128xf32>
    %25 = tpu.iota {dimensions = array<i32: 0>} : vector<22x128xi32>
    %26 = tpu.iota {dimensions = array<i32: 1>} : vector<22x128xi32>
    %c1_i32 = arith.constant 1 : i32
    %27 = vector.broadcast %c1_i32 : i32 to vector<22x128xi32>
    %28 = arith.cmpi sge, %25, %27 : vector<22x128xi32>
    %c20_i32 = arith.constant 20 : i32
    %29 = vector.broadcast %c20_i32 : i32 to vector<22x128xi32>
    %30 = arith.cmpi sle, %25, %29 : vector<22x128xi32>
    %31 = arith.andi %28, %30 : vector<22x128xi1>
    %c1_i32_18 = arith.constant 1 : i32
    %32 = vector.broadcast %c1_i32_18 : i32 to vector<22x128xi32>
    %33 = arith.cmpi sge, %26, %32 : vector<22x128xi32>
    %c20_i32_19 = arith.constant 20 : i32
    %34 = vector.broadcast %c20_i32_19 : i32 to vector<22x128xi32>
    %35 = arith.cmpi sle, %26, %34 : vector<22x128xi32>
    %36 = arith.andi %33, %35 : vector<22x128xi1>
    %37 = arith.andi %31, %36 : vector<22x128xi1>
    %38 = vector.broadcast %0 : f32 to vector<22x128xf32>
    %39 = arith.addf %24, %38 : vector<22x128xf32>
    %cst = arith.constant 0.000000e+00 : f32
    %40 = vector.broadcast %cst : f32 to vector<22x128xf32>
    %41 = arith.select %37, %39, %40 : vector<22x128xi1>, vector<22x128xf32>
    %c0_20 = arith.constant 0 : index
    %c0_21 = arith.constant 0 : index
    %42 = vector.load %arg7[%c0_20, %c0_21] : memref<22x128xf32, #tpu.memory_space<vmem>>, vector<22x128xf32>
    tpu.vector_store %arg7[%c0_20, %c0_21], %41 {strides = array<i32>} : memref<22x128xf32, #tpu.memory_space<vmem>>, vector<22x128xf32>,
    %c0_22 = arith.constant 0 : index
    %43 = memref.load %arg3[%c0_22] : memref<4xf32, #tpu.memory_space<smem>>
    %c0_23 = arith.constant 0 : index
    %c0_24 = arith.constant 0 : index
    %c1_25 = arith.constant 1 : index
    %c0_26 = arith.constant 0 : index
    %44 = vector.load %arg1[%c0_23, %c0_24, %c1_25, %c0_26] : memref<1x4x22x128xf32, #tpu.memory_space<vmem>>, vector<1x1x20x128xf32>
    %45 = vector.shape_cast %44 : vector<1x1x20x128xf32> to vector<20x128xf32>
    %46 = vector.broadcast %43 : f32 to vector<20x128xf32>
    %47 = arith.mulf %46, %45 : vector<20x128xf32>
    %c1_27 = arith.constant 1 : index
    %48 = memref.load %arg3[%c1_27] : memref<4xf32, #tpu.memory_space<smem>>
    %c0_28 = arith.constant 0 : index
    %c1_29 = arith.constant 1 : index
    %c1_30 = arith.constant 1 : index
    %c0_31 = arith.constant 0 : index
    %49 = vector.load %arg1[%c0_28, %c1_29, %c1_30, %c0_31] : memref<1x4x22x128xf32, #tpu.memory_space<vmem>>, vector<1x1x20x128xf32>
    %50 = vector.shape_cast %49 : vector<1x1x20x128xf32> to vector<20x128xf32>
    %51 = vector.broadcast %48 : f32 to vector<20x128xf32>
    %52 = arith.mulf %51, %50 : vector<20x128xf32>
    %53 = arith.addf %47, %52 : vector<20x128xf32>
    %c2_32 = arith.constant 2 : index
    %54 = memref.load %arg3[%c2_32] : memref<4xf32, #tpu.memory_space<smem>>
    %c0_33 = arith.constant 0 : index
    %c2_34 = arith.constant 2 : index
    %c1_35 = arith.constant 1 : index
    %c0_36 = arith.constant 0 : index
    %55 = vector.load %arg1[%c0_33, %c2_34, %c1_35, %c0_36] : memref<1x4x22x128xf32, #tpu.memory_space<vmem>>, vector<1x1x20x128xf32>
    %56 = vector.shape_cast %55 : vector<1x1x20x128xf32> to vector<20x128xf32>
    %57 = vector.broadcast %54 : f32 to vector<20x128xf32>
    %58 = arith.mulf %57, %56 : vector<20x128xf32>
    %59 = arith.addf %53, %58 : vector<20x128xf32>
    %c3_37 = arith.constant 3 : index
    %60 = memref.load %arg3[%c3_37] : memref<4xf32, #tpu.memory_space<smem>>
    %c0_38 = arith.constant 0 : index
    %c3_39 = arith.constant 3 : index
    %c1_40 = arith.constant 1 : index
    %c0_41 = arith.constant 0 : index
    %61 = vector.load %arg1[%c0_38, %c3_39, %c1_40, %c0_41] : memref<1x4x22x128xf32, #tpu.memory_space<vmem>>, vector<1x1x20x128xf32>
    %62 = vector.shape_cast %61 : vector<1x1x20x128xf32> to vector<20x128xf32>
    %63 = vector.broadcast %60 : f32 to vector<20x128xf32>
    %64 = arith.mulf %63, %62 : vector<20x128xf32>
    %65 = arith.addf %59, %64 : vector<20x128xf32>
    %c0_42 = arith.constant 0 : index
    %c0_43 = arith.constant 0 : index
    %66 = vector.load %arg7[%c0_42, %c0_43] : memref<22x128xf32, #tpu.memory_space<vmem>>, vector<20x128xf32>
    %c1_44 = arith.constant 1 : index
    %c0_45 = arith.constant 0 : index
    %67 = vector.load %arg7[%c1_44, %c0_45] : memref<22x128xf32, #tpu.memory_space<vmem>>, vector<20x128xf32>
    %c2_46 = arith.constant 2 : index
    %c0_47 = arith.constant 0 : index
    %68 = vector.load %arg7[%c2_46, %c0_47] : memref<22x128xf32, #tpu.memory_space<vmem>>, vector<20x128xf32>
    %c0_48 = arith.constant 0 : index
    %69 = memref.load %arg4[%c0_48] : memref<9xf32, #tpu.memory_space<smem>>
    %70 = vector.broadcast %69 : f32 to vector<20x128xf32>
    %71 = arith.mulf %70, %66 : vector<20x128xf32>
    %c3_49 = arith.constant 3 : index
    %72 = memref.load %arg4[%c3_49] : memref<9xf32, #tpu.memory_space<smem>>
    %73 = vector.broadcast %72 : f32 to vector<20x128xf32>
    %74 = arith.mulf %73, %67 : vector<20x128xf32>
    %75 = arith.addf %71, %74 : vector<20x128xf32>
    %c6 = arith.constant 6 : index
    %76 = memref.load %arg4[%c6] : memref<9xf32, #tpu.memory_space<smem>>
    %77 = vector.broadcast %76 : f32 to vector<20x128xf32>
    %78 = arith.mulf %77, %68 : vector<20x128xf32>
    %79 = arith.addf %75, %78 : vector<20x128xf32>
    %c1_50 = arith.constant 1 : index
    %80 = memref.load %arg4[%c1_50] : memref<9xf32, #tpu.memory_space<smem>>
    %81 = vector.broadcast %80 : f32 to vector<20x128xf32>
    %82 = arith.mulf %81, %66 : vector<20x128xf32>
    %c4 = arith.constant 4 : index
    %83 = memref.load %arg4[%c4] : memref<9xf32, #tpu.memory_space<smem>>
    %84 = vector.broadcast %83 : f32 to vector<20x128xf32>
    %85 = arith.mulf %84, %67 : vector<20x128xf32>
    %86 = arith.addf %82, %85 : vector<20x128xf32>
    %c7 = arith.constant 7 : index
    %87 = memref.load %arg4[%c7] : memref<9xf32, #tpu.memory_space<smem>>
    %88 = vector.broadcast %87 : f32 to vector<20x128xf32>
    %89 = arith.mulf %88, %68 : vector<20x128xf32>
    %90 = arith.addf %86, %89 : vector<20x128xf32>
    %c2_51 = arith.constant 2 : index
    %91 = memref.load %arg4[%c2_51] : memref<9xf32, #tpu.memory_space<smem>>
    %92 = vector.broadcast %91 : f32 to vector<20x128xf32>
    %93 = arith.mulf %92, %66 : vector<20x128xf32>
    %c5 = arith.constant 5 : index
    %94 = memref.load %arg4[%c5] : memref<9xf32, #tpu.memory_space<smem>>
    %95 = vector.broadcast %94 : f32 to vector<20x128xf32>
    %96 = arith.mulf %95, %67 : vector<20x128xf32>
    %97 = arith.addf %93, %96 : vector<20x128xf32>
    %c8 = arith.constant 8 : index
    %98 = memref.load %arg4[%c8] : memref<9xf32, #tpu.memory_space<smem>>
    %99 = vector.broadcast %98 : f32 to vector<20x128xf32>
    %100 = arith.mulf %99, %68 : vector<20x128xf32>
    %101 = arith.addf %97, %100 : vector<20x128xf32>
    %c127_i32 = arith.constant 127 : i32
    %102 = tpu.dynamic_rotate %90 by %c127_i32 dim 1 : vector<20x128xf32>, i32 -> vector<20x128xf32>
    %103 = arith.addf %79, %102 : vector<20x128xf32>
    %c126_i32 = arith.constant 126 : i32
    %104 = tpu.dynamic_rotate %101 by %c126_i32 dim 1 : vector<20x128xf32>, i32 -> vector<20x128xf32>
    %105 = arith.addf %103, %104 : vector<20x128xf32>
    %c127_i32_52 = arith.constant 127 : i32
    %106 = tpu.dynamic_rotate %65 by %c127_i32_52 dim 1 : vector<20x128xf32>, i32 -> vector<20x128xf32>
    %107 = arith.addf %105, %106 : vector<20x128xf32>
    %108 = vector.broadcast %1 : f32 to vector<20x128xf32>
    %109 = arith.addf %107, %108 : vector<20x128xf32>
    %110 = math.tanh %109 : vector<20x128xf32>
    %c0_53 = arith.constant 0 : index
    %c0_54 = arith.constant 0 : index
    %c0_55 = arith.constant 0 : index
    %111 = vector.load %arg6[%c0_53, %c0_54, %c0_55] : memref<1x20x128xf32, #tpu.memory_space<vmem>>, vector<1x20x128xf32>
    %112 = vector.shape_cast %111 : vector<1x20x128xf32> to vector<20x128xf32>
    %113 = vector.shape_cast %110 : vector<20x128xf32> to vector<1x20x128xf32>
    tpu.vector_store %arg6[%c0_53, %c0_54, %c0_55], %113 {strides = array<i32>} : memref<1x20x128xf32, #tpu.memory_space<vmem>>, vector<1x20x128xf32>,
    return
  }
  func.func @transform_0(%arg0: i32) -> (i32, i32, i32, i32) {
    %c0_i32 = arith.constant 0 : i32
    %c0_i32_0 = arith.constant 0 : i32
    %c0_i32_1 = arith.constant 0 : i32
    %c0_i32_2 = arith.constant 0 : i32
    return %arg0, %c0_i32, %c0_i32_0, %c0_i32_1 : i32, i32, i32, i32
  }
  func.func @transform_1(%arg0: i32) -> i32 {
    %c0_i32 = arith.constant 0 : i32
    %c0_i32_0 = arith.constant 0 : i32
    return %c0_i32 : i32
  }
  func.func @transform_2(%arg0: i32) -> i32 {
    %c0_i32 = arith.constant 0 : i32
    %c0_i32_0 = arith.constant 0 : i32
    return %c0_i32 : i32
  }
  func.func @transform_3(%arg0: i32) -> i32 {
    %c0_i32 = arith.constant 0 : i32
    %c0_i32_0 = arith.constant 0 : i32
    return %c0_i32 : i32
  }
  func.func @transform_4(%arg0: i32) -> i32 {
    %c0_i32 = arith.constant 0 : i32
    %c0_i32_0 = arith.constant 0 : i32
    return %c0_i32 : i32
  }
  func.func @transform_5(%arg0: i32) -> (i32, i32, i32) {
    %c0_i32 = arith.constant 0 : i32
    %c0_i32_0 = arith.constant 0 : i32
    %c0_i32_1 = arith.constant 0 : i32
    return %arg0, %c0_i32, %c0_i32_0 : i32, i32, i32
  }
}

</mosaic_0001>

<llo_original>
// kernel: squeeze.10
$region0: #{squeeze.10}
  %s0 = inlined_call_operand.vmem [shape: f32[3,3], index: 0, kind: input, shape index: {}]
  %s1 = inlined_call_operand.vmem [shape: f32[9], index: 1, kind: output, shape index: {}]
  $region1: #{squeeze.10} parent=0
    #allocation0 [shape = 'u8[4096]{0}', space=vmem, size = 0x1000, scoped, tag = 'scoped mem for output reshape']
    #allocation1 [shape = 'u8[4096]{0}', space=vmem, size = 0x1000, scoped, tag = 'scoped mem for input reshape']
    %s3 = ssub.s32 16, 1
    %v4 = vld [vmem:[%s0] sm:%s3]
    %5 = vst [vmem:[#allocation1] sm:%s3] %v4
    %v6 = vld [vmem:[#allocation1] sm:$0x1]
    %vm7 = vcmask 23552
    %8 = vst.msk [vmem:[#allocation0] sm:$0x1] %vm7, %v6
    %s9 = scalar_lea.vmem [#allocation1], 2
    %v10 = vld [vmem:[%s9] sm:$0x1]
    %11 = vrot.lane.b32.xlu0 %v10, 6
    %v12 = vpop.permute.xlu0 %11
    %vm13 = vcmask 72752
    %14 = vst.msk [vmem:[#allocation0] sm:$0x1] %vm13, %v12
    %s15 = scalar_lea.vmem [#allocation1], 1
    %v16 = vld [vmem:[%s15] sm:$0x1]
    %17 = vrot.lane.b32.xlu0 %v16, 3
    %v18 = vpop.permute.xlu0 %17
    %vm19 = vcmask 48152
    %20 = vst.msk [vmem:[#allocation0] sm:$0x1] %vm19, %v18
    %s22 = ssub.s32 2, 1
    %v23 = vld [vmem:[#allocation0] sm:%s22]
    %s25 = ssub.s32 2, 1
    %26 = vst [vmem:[%s1] sm:%s25] %v23

// kernel: _model_tanh_forward.1
$region0: #{_model_tanh_forward.1}
  #allocation0 [shape = 'u32[]', space=smem, size = 0x4, offset = 0x4, fixed_abs, tag = 'smem constant byte address 0x4 - core index']
  #allocation1 [shape = 'u32[72,128]{1,0:T(1,128)}', space=vmem, size = 0x9000, scoped, tag = 'internal scratch']
  #allocation2 [shape = 'f32[22,128]{1,0:T(8,128)}', space=vmem, size = 0x3000, scoped, tag = 'scratch operand']
  %s0 = inlined_call_operand.vmem [shape: f32[2,4,22,128], index: 0, kind: input, shape index: {}]
  %s1 = inlined_call_operand.vmem [shape: f32[4], index: 1, kind: input, shape index: {}]
  %s2 = inlined_call_operand.vmem [shape: f32[4], index: 2, kind: input, shape index: {}]
  %s3 = inlined_call_operand.vmem [shape: f32[9], index: 3, kind: input, shape index: {}]
  %s4 = inlined_call_operand.vmem [shape: f32[2], index: 4, kind: input, shape index: {}]
  %s5 = inlined_call_operand.vmem [shape: f32[2,20,128], index: 5, kind: output, shape index: {}]
  %s6 = sld [smem:[#allocation0]]
  $region69: #{_model_tanh_forward.1} parent=0
    _
  %s8 = ssub.s32 1, %s6
  %s9 = scalar_select 0, %s8, %s6
  $region1: #{_model_tanh_forward.1} parent=0
    #allocation3 [shape = 'u8[512]{0}', space=smem, size = 0x200, scoped, tag = 'input window, operand 1, single buffered']
    #allocation4 [shape = 's32[2]{0}', space=sflag, size = 0x8, scoped, tag = 'scoped memory for _model_tanh_forward.1']
    #allocation5 [shape = 'u8[512]{0}', space=smem, size = 0x200, scoped, tag = 'input window, operand 2, single buffered']
    #allocation6 [shape = 's32[1]{0}', space=sflag, size = 0x4, scoped, tag = 'scoped memory for _model_tanh_forward.1']
    #allocation7 [shape = 'u8[512]{0}', space=smem, size = 0x200, scoped, tag = 'input window, operand 3, single buffered']
    #allocation8 [shape = 'u8[512]{0}', space=smem, size = 0x200, scoped, tag = 'input window, operand 4, single buffered']
    #allocation9 [shape = 's32[1]{0}', space=sflag, size = 0x4, scoped, tag = 'scoped memory for _model_tanh_forward.1']
    %10 = vsyncpa [#allocation4], 0
    %11 = vsyncpa [#allocation6], 0
    %12 = vsyncpa [#allocation9], 0
    loop: start=0, step=1, limit=4
    $region2: #{_model_tanh_forward.1} parent=1 // loop_pre_header
      _
    $region3: #{_model_tanh_forward.1} parent=1 // loop_header
      %s14 = sphi 0, %s18
      %p15 = scmp.ge.s32.totalorder %s14, 4
      %s24 = sphi 0, %s26
      %s27 = sphi 0, %s24
      %s28 = sphi 0, %s27
      %s44 = sphi 0, %s28
      %s48 = sphi 0, %s48
      %s50 = sphi 0, %s48
      %s51 = sphi 0, %s50
      %s65 = sphi 0, %s51
      %s69 = sphi 0, %s69
      %s71 = sphi 0, %s69
      %s72 = sphi 0, %s71
      %s86 = sphi 0, %s72
      %s90 = sphi 0, %s90
      %s92 = sphi 0, %s90
      %s93 = sphi 0, %s92
      %s107 = sphi 0, %s93
      %s111 = sphi 0, %s111
      %s113 = sphi 0, %s111
      %s114 = sphi 0, %s113
      %s128 = sphi 0, %s114
      %s134 = sphi 0, %s136
      %s137 = sphi 0, %s134
      %s138 = sphi 0, %s137
      %s154 = sphi 0, %s138
    $region4: #{_model_tanh_forward.1} parent=1 // loop_header_branch
      %17 = sbr.rel (%p15) target = $region8
    $region5: #{_model_tanh_forward.1} parent=1 // loop_body
      %s19 = ssub.s32 %s14, 1
      %s20 = ssub.s32 %s14, 2
      %s21 = sadd.s32 %s14, 1
      %s22 = ssub.s32 %s14, %s21
      %p23 = scmp.eq.s32.totalorder %s22, 0
      %s25 = sadd.s32 %s24, 1
      %s26 = scalar_select %p23, %s24, %s25
      %p29 = pneg %p23
      %p30 = scmp.eq.s32.totalorder %s14, 1
      %p31 = por %p29, %p30
      %p32 = scmp.ne.s32.totalorder %s24, %s27
      %p33 = scmp.eq.s32.totalorder %s14, 0
      %p34 = por %p32, %p33
      %p35 = scmp.ne.s32.totalorder %s24, %s27
      %p36 = scmp.eq.s32.totalorder %s19, 1
      %p37 = por %p35, %p36
      %p38 = scmp.ne.s32.totalorder %s27, %s28
      %p39 = scmp.eq.s32.totalorder %s19, 0
      %p40 = por %p38, %p39
      %p41 = scmp.ne.s32.totalorder %s27, %s28
      %p42 = scmp.eq.s32.totalorder %s20, 1
      %p43 = por %p41, %p42
      %p45 = scmp.ne.s32.totalorder %s28, %s44
      %p46 = scmp.eq.s32.totalorder %s20, 0
      %p47 = por %p45, %p46
      %s49 = sadd.s32 %s48, 1
      %p52 = scmp.eq.s32.totalorder %s14, 1
      %p53 = scmp.ne.s32.totalorder %s48, %s50
      %p54 = scmp.eq.s32.totalorder %s14, 0
      %p55 = por %p53, %p54
      %p56 = scmp.ne.s32.totalorder %s48, %s50
      %p57 = scmp.eq.s32.totalorder %s19, 1
      %p58 = por %p56, %p57
      %p59 = scmp.ne.s32.totalorder %s50, %s51
      %p60 = scmp.eq.s32.totalorder %s19, 0
      %p61 = por %p59, %p60
      %p62 = scmp.ne.s32.totalorder %s50, %s51
      %p63 = scmp.eq.s32.totalorder %s20, 1
      %p64 = por %p62, %p63
      %p66 = scmp.ne.s32.totalorder %s51, %s65
      %p67 = scmp.eq.s32.totalorder %s20, 0
      %p68 = por %p66, %p67
      %s70 = sadd.s32 %s69, 1
      %p73 = scmp.eq.s32.totalorder %s14, 1
      %p74 = scmp.ne.s32.totalorder %s69, %s71
      %p75 = scmp.eq.s32.totalorder %s14, 0
      %p76 = por %p74, %p75
      %p77 = scmp.ne.s32.totalorder %s69, %s71
      %p78 = scmp.eq.s32.totalorder %s19, 1
      %p79 = por %p77, %p78
      %p80 = scmp.ne.s32.totalorder %s71, %s72
      %p81 = scmp.eq.s32.totalorder %s19, 0
      %p82 = por %p80, %p81
      %p83 = scmp.ne.s32.totalorder %s71, %s72
      %p84 = scmp.eq.s32.totalorder %s20, 1
      %p85 = por %p83, %p84
      %p87 = scmp.ne.s32.totalorder %s72, %s86
      %p88 = scmp.eq.s32.totalorder %s20, 0
      %p89 = por %p87, %p88
      %s91 = sadd.s32 %s90, 1
      %p94 = scmp.eq.s32.totalorder %s14, 1
      %p95 = scmp.ne.s32.totalorder %s90, %s92
      %p96 = scmp.eq.s32.totalorder %s14, 0
      %p97 = por %p95, %p96
      %p98 = scmp.ne.s32.totalorder %s90, %s92
      %p99 = scmp.eq.s32.totalorder %s19, 1
      %p100 = por %p98, %p99
      %p101 = scmp.ne.s32.totalorder %s92, %s93
      %p102 = scmp.eq.s32.totalorder %s19, 0
      %p103 = por %p101, %p102
      %p104 = scmp.ne.s32.totalorder %s92, %s93
      %p105 = scmp.eq.s32.totalorder %s20, 1
      %p106 = por %p104, %p105
      %p108 = scmp.ne.s32.totalorder %s93, %s107
      %p109 = scmp.eq.s32.totalorder %s20, 0
      %p110 = por %p108, %p109
      %s112 = sadd.s32 %s111, 1
      %p115 = scmp.eq.s32.totalorder %s14, 1
      %p116 = scmp.ne.s32.totalorder %s111, %s113
      %p117 = scmp.eq.s32.totalorder %s14, 0
      %p118 = por %p116, %p117
      %p119 = scmp.ne.s32.totalorder %s111, %s113
      %p120 = scmp.eq.s32.totalorder %s19, 1
      %p121 = por %p119, %p120
      %p122 = scmp.ne.s32.totalorder %s113, %s114
      %p123 = scmp.eq.s32.totalorder %s19, 0
      %p124 = por %p122, %p123
      %p125 = scmp.ne.s32.totalorder %s113, %s114
      %p126 = scmp.eq.s32.totalorder %s20, 1
      %p127 = por %p125, %p126
      %p129 = scmp.ne.s32.totalorder %s114, %s128
      %p130 = scmp.eq.s32.totalorder %s20, 0
      %p131 = por %p129, %p130
      %s132 = ssub.s32 %s14, %s21
      %p133 = scmp.eq.s32.totalorder %s132, 0
      %s135 = sadd.s32 %s134, 1
      %s136 = scalar_select %p133, %s134, %s135
      %p139 = pneg %p133
      %p140 = scmp.eq.s32.totalorder %s14, 1
      %p141 = por %p139, %p140
      %p142 = scmp.ne.s32.totalorder %s134, %s137
      %p143 = scmp.eq.s32.totalorder %s14, 0
      %p144 = por %p142, %p143
      %p145 = scmp.ne.s32.totalorder %s134, %s137
      %p146 = scmp.eq.s32.totalorder %s19, 1
      %p147 = por %p145, %p146
      %p148 = scmp.ne.s32.totalorder %s137, %s138
      %p149 = scmp.eq.s32.totalorder %s19, 0
      %p150 = por %p148, %p149
      %p151 = scmp.ne.s32.totalorder %s137, %s138
      %p152 = scmp.eq.s32.totalorder %s20, 1
      %p153 = por %p151, %p152
      %p155 = scmp.ne.s32.totalorder %s138, %s154
      %p156 = scmp.eq.s32.totalorder %s20, 0
      %p157 = por %p155, %p156
      %p158 = scmp.le.s32.totalorder 1, %s14
      %p159 = scmp.lt.s32.totalorder %s14, 3
      %p160 = pnand %p158, %p159
      %p161 = pneg %p160
      // Predicated region
      $region9: #{_model_tanh_forward.1} parent=5 // pred_check
        _
      $region10: #{_model_tanh_forward.1} parent=5 // pred_check_branch
        %163 = sbr.rel (%p160) target = $region12
      $region11: #{_model_tanh_forward.1} parent=5 // pred_region
        %s164 = ssub.s32 %s14, 1
        // Predicated region
        $region13: #{_model_tanh_forward.1} parent=11 // pred_check
          %p165 = pneg %p61
        $region14: #{_model_tanh_forward.1} parent=11 // pred_check_branch
          %167 = sbr.rel (%p165) target = $region16
        $region15: #{_model_tanh_forward.1} parent=11 // pred_region
          %169 = vsyncadd [#allocation4], 0
          %s171 = sshll.u32 %s1, 4
          %s172 = int_to_ptr.vmem [resolvable:$true] %s171
          %174 = dma.vmem_to_smem %s172, 16, [#allocation3], [#allocation4]
        $region16: #{_model_tanh_forward.1} parent=11 // pred_fallthru
          _
        // Predicated region
        $region17: #{_model_tanh_forward.1} parent=11 // pred_check
          %p175 = pneg %p82
        $region18: #{_model_tanh_forward.1} parent=11 // pred_check_branch
          %177 = sbr.rel (%p175) target = $region20
        $region19: #{_model_tanh_forward.1} parent=11 // pred_region
          %179 = vsyncadd [#allocation6], 0
          %s181 = sshll.u32 %s2, 4
          %s182 = int_to_ptr.vmem [resolvable:$true] %s181
          %184 = dma.vmem_to_smem %s182, 16, [#allocation5], [#allocation6]
        $region20: #{_model_tanh_forward.1} parent=11 // pred_fallthru
          _
        // Predicated region
        $region21: #{_model_tanh_forward.1} parent=11 // pred_check
          %p185 = pneg %p103
        $region22: #{_model_tanh_forward.1} parent=11 // pred_check_branch
          %187 = sbr.rel (%p185) target = $region24
        $region23: #{_model_tanh_forward.1} parent=11 // pred_region
          %189 = vsyncadd [#allocation6], 0
          %s191 = sshll.u32 %s3, 4
          %s192 = int_to_ptr.vmem [resolvable:$true] %s191
          %194 = dma.vmem_to_smem %s192, 16, [#allocation7], [#allocation6]
        $region24: #{_model_tanh_forward.1} parent=11 // pred_fallthru
          _
        // Predicated region
        $region25: #{_model_tanh_forward.1} parent=11 // pred_check
          %p195 = pneg %p124
        $region26: #{_model_tanh_forward.1} parent=11 // pred_check_branch
          %197 = sbr.rel (%p195) target = $region28
        $region27: #{_model_tanh_forward.1} parent=11 // pred_region
          %199 = vsyncadd [#allocation9], 0
          %s201 = sshll.u32 %s4, 4
          %s202 = int_to_ptr.vmem [resolvable:$true] %s201
          %204 = dma.vmem_to_smem %s202, 16, [#allocation8], [#allocation9]
        $region28: #{_model_tanh_forward.1} parent=11 // pred_fallthru
          _
      $region12: #{_model_tanh_forward.1} parent=5 // pred_fallthru
        _
      %p205 = scmp.lt.s32.totalorder %s14, 2
      // Predicated region
      $region29: #{_model_tanh_forward.1} parent=5 // pred_check
        %p206 = pneg %p205
      $region30: #{_model_tanh_forward.1} parent=5 // pred_check_branch
        %208 = sbr.rel (%p206) target = $region32
      $region31: #{_model_tanh_forward.1} parent=5 // pred_region
        // Predicated region
        $region33: #{_model_tanh_forward.1} parent=31 // pred_check
          %p209 = pneg %p34
        $region34: #{_model_tanh_forward.1} parent=31 // pred_check_branch
          %211 = sbr.rel (%p209) target = $region36
        $region35: #{_model_tanh_forward.1} parent=31 // pred_region
          %p212 = scmp.lt.s32.totalorder %s14, 1
          %s213 = scalar_select %p212, %s14, 1
          %s214 = smul.addr %s213, 12
          %s215 = smul.addr %s214, 8
          %s216 = scalar_lea.vmem %s0, %s215
        $region36: #{_model_tanh_forward.1} parent=31 // pred_fallthru
          _
      $region32: #{_model_tanh_forward.1} parent=5 // pred_fallthru
        _
      %p217 = scmp.le.s32.totalorder 1, %s14
      %p218 = scmp.lt.s32.totalorder %s14, 3
      %p219 = pnand %p217, %p218
      %p220 = pneg %p219
      // Predicated region
      $region37: #{_model_tanh_forward.1} parent=5 // pred_check
        _
      $region38: #{_model_tanh_forward.1} parent=5 // pred_check_branch
        %222 = sbr.rel (%p219) target = $region40
      $region39: #{_model_tanh_forward.1} parent=5 // pred_region
        %s223 = ssub.s32 %s14, 1
        // Predicated region
        $region41: #{_model_tanh_forward.1} parent=39 // pred_check
          %p224 = pneg %p61
        $region42: #{_model_tanh_forward.1} parent=39 // pred_check_branch
          %226 = sbr.rel (%p224) target = $region44
        $region43: #{_model_tanh_forward.1} parent=39 // pred_region
          %228 = dma.done [#allocation4], 16
        $region44: #{_model_tanh_forward.1} parent=39 // pred_fallthru
          _
        // Predicated region
        $region45: #{_model_tanh_forward.1} parent=39 // pred_check
          %p229 = pneg %p82
        $region46: #{_model_tanh_forward.1} parent=39 // pred_check_branch
          %231 = sbr.rel (%p229) target = $region48
        $region47: #{_model_tanh_forward.1} parent=39 // pred_region
          %233 = dma.done [#allocation6], 16
        $region48: #{_model_tanh_forward.1} parent=39 // pred_fallthru
          _
        // Predicated region
        $region49: #{_model_tanh_forward.1} parent=39 // pred_check
          %p234 = pneg %p103
        $region50: #{_model_tanh_forward.1} parent=39 // pred_check_branch
          %236 = sbr.rel (%p234) target = $region52
        $region51: #{_model_tanh_forward.1} parent=39 // pred_region
          %238 = dma.done [#allocation6], 16
        $region52: #{_model_tanh_forward.1} parent=39 // pred_fallthru
          _
        // Predicated region
        $region53: #{_model_tanh_forward.1} parent=39 // pred_check
          %p239 = pneg %p124
        $region54: #{_model_tanh_forward.1} parent=39 // pred_check_branch
          %241 = sbr.rel (%p239) target = $region56
        $region55: #{_model_tanh_forward.1} parent=39 // pred_region
          %243 = dma.done [#allocation9], 16
        $region56: #{_model_tanh_forward.1} parent=39 // pred_fallthru
          _
        %244 = sfence
        %p245 = scmp.lt.s32.totalorder %s19, 1
        %s246 = scalar_select %p245, %s19, 1
        %s247 = smul.addr %s246, 12
        %s248 = smul.addr %s247, 8
        %s249 = scalar_lea.vmem %s0, %s248
        %p250 = pneg %p40
        %p251 = pneg %p37
        %p252 = pneg %p61
        %p253 = pneg %p58
        %p254 = pneg %p82
        %p255 = pneg %p79
        %p256 = pneg %p103
        %p257 = pneg %p100
        %p258 = pneg %p124
        %p259 = pneg %p121
        %p260 = pneg %p150
        %p261 = pneg %p147
        %p262 = scmp.lt.s32.totalorder %s19, 1
        %s263 = scalar_select %p262, %s19, 1
        %s264 = smul.addr %s263, 3
        %s265 = smul.addr %s264, 8
        %s266 = scalar_lea.vmem %s5, %s265
        %p267 = scmp.lt.s32.totalorder %s19, 1
        %s268 = scalar_select %p267, %s19, 1
        %s269 = smul.addr %s268, 12
        %s270 = smul.addr %s269, 8
        %s271 = scalar_lea.vmem %s0, %s270
        %p272 = scmp.lt.s32.totalorder %s19, 1
        %s273 = scalar_select %p272, %s19, 1
        %s274 = smul.addr %s273, 3
        %s275 = smul.addr %s274, 8
        %s276 = scalar_lea.vmem %s5, %s275
        %s277 = sld [smem:[#allocation8]]
        %s278 = sld [smem:[#allocation8 + $0x1]]
        %s279 = sld [smem:[#allocation3]]
        %v280 = vld [vmem:[%s271] sm:$0xff]
        %v281 = vld [vmem:[%s271 + $0x8] sm:$0xff]
        %v282 = vld [vmem:[%s271 + $0x10] sm:$0x3f]
        %v283 = vstv %s279
        %v284 = vmul.f32 %v283, %v280
        %v285 = vmul.f32 %v283, %v281
        %v286 = vmul.f32 %v283, %v282
        %s287 = sld [smem:[#allocation3 + $0x1]]
        %s288 = scalar_lea.vmem %s271, 24
        %v289 = vld [vmem:[%s288] sm:$0xff]
        %v290 = vld [vmem:[%s288 + $0x8] sm:$0xff]
        %v291 = vld [vmem:[%s288 + $0x10] sm:$0x3f]
        %v292 = vstv %s287
        %v293 = vmul.f32 %v292, %v289
        %v294 = vmul.f32 %v292, %v290
        %v295 = vmul.f32 %v292, %v291
        %v296 = vadd.f32 %v284, %v293
        %v297 = vadd.f32 %v285, %v294
        %v298 = vadd.f32 %v286, %v295
        %s299 = sld [smem:[#allocation3 + $0x2]]
        %s300 = scalar_lea.vmem %s271, 48
        %v301 = vld [vmem:[%s300] sm:$0xff]
        %v302 = vld [vmem:[%s300 + $0x8] sm:$0xff]
        %v303 = vld [vmem:[%s300 + $0x10] sm:$0x3f]
        %v304 = vstv %s299
        %v305 = vmul.f32 %v304, %v301
        %v306 = vmul.f32 %v304, %v302
        %v307 = vmul.f32 %v304, %v303
        %v308 = vadd.f32 %v296, %v305
        %v309 = vadd.f32 %v297, %v306
        %v310 = vadd.f32 %v298, %v307
        %s311 = sld [smem:[#allocation3 + $0x3]]
        %s312 = scalar_lea.vmem %s271, 72
        %v313 = vld [vmem:[%s312] sm:$0xff]
        %v314 = vld [vmem:[%s312 + $0x8] sm:$0xff]
        %v315 = vld [vmem:[%s312 + $0x10] sm:$0x3f]
        %v316 = vstv %s311
        %v317 = vmul.f32 %v316, %v313
        %v318 = vmul.f32 %v316, %v314
        %v319 = vmul.f32 %v316, %v315
        %v320 = vadd.f32 %v308, %v317
        %v321 = vadd.f32 %v309, %v318
        %v322 = vadd.f32 %v310, %v319
        %v323 = vlaneseq
        %v324 = vshrl.u32 %v323, 7
        %v325 = vadd.s32 %v324, 8
        %v326 = vadd.s32 %v324, 16
        %v327 = vlaneseq
        %v328 = vand.u32 %v327, 127
        %vm329 = vcmp.ge.s32.totalorder %v324, 1
        %vm330 = vcmp.ge.s32.totalorder %v325, 1
        %vm331 = vcmp.ge.s32.totalorder %v326, 1
        %vm332 = vcmp.le.s32.totalorder %v324, 20
        %vm333 = vcmp.le.s32.totalorder %v325, 20
        %vm334 = vcmp.le.s32.totalorder %v326, 20
        %vm335 = vmand %vm329, %vm332
        %vm336 = vmand %vm330, %vm333
        %vm337 = vmand %vm331, %vm334
        %vm338 = vcmp.ge.s32.totalorder %v328, 1
        %vm339 = vcmp.le.s32.totalorder %v328, 20
        %vm340 = vmand %vm338, %vm339
        %vm341 = vmand %vm335, %vm340
        %vm342 = vmand %vm336, %vm340
        %vm343 = vmand %vm337, %vm340
        %v344 = vstv %s277
        %v345 = vadd.f32 %v320, %v344
        %v346 = vadd.f32 %v321, %v344
        %v347 = vadd.f32 %v322, %v344
        %v348 = vsel %vm341, %v345, 0.0
        %v349 = vsel %vm342, %v346, 0.0
        %v350 = vsel %vm343, %v347, 0.0
        %351 = vst [vmem:[#allocation2] sm:$0xff] %v348
        %352 = vst [vmem:[#allocation2 + $0x8] sm:$0xff] %v349
        %353 = vst [vmem:[#allocation2 + $0x10] sm:$0x3f] %v350
        %s354 = sld [smem:[#allocation5]]
        %v355 = vld [vmem:[%s271 + $0x1] sm:$0xff]
        %v356 = vld [vmem:[%s271 + $0x9] sm:$0xff]
        %v357 = vld [vmem:[%s271 + $0x11] sm:$0xf]
        %v358 = vstv %s354
        %v359 = vmul.f32 %v358, %v355
        %v360 = vmul.f32 %v358, %v356
        %v361 = vmul.f32 %v358, %v357
        %s362 = sld [smem:[#allocation5 + $0x1]]
        %v363 = vld [vmem:[%s288 + $0x1] sm:$0xff]
        %v364 = vld [vmem:[%s288 + $0x9] sm:$0xff]
        %v365 = vld [vmem:[%s288 + $0x11] sm:$0xf]
        %v366 = vstv %s362
        %v367 = vmul.f32 %v366, %v363
        %v368 = vmul.f32 %v366, %v364
        %v369 = vmul.f32 %v366, %v365
        %v370 = vadd.f32 %v359, %v367
        %v371 = vadd.f32 %v360, %v368
        %v372 = vadd.f32 %v361, %v369
        %s373 = sld [smem:[#allocation5 + $0x2]]
        %v374 = vld [vmem:[%s300 + $0x1] sm:$0xff]
        %v375 = vld [vmem:[%s300 + $0x9] sm:$0xff]
        %v376 = vld [vmem:[%s300 + $0x11] sm:$0xf]
        %v377 = vstv %s373
        %v378 = vmul.f32 %v377, %v374
        %v379 = vmul.f32 %v377, %v375
        %v380 = vmul.f32 %v377, %v376
        %v381 = vadd.f32 %v370, %v378
        %v382 = vadd.f32 %v371, %v379
        %v383 = vadd.f32 %v372, %v380
        %s384 = sld [smem:[#allocation5 + $0x3]]
        %v385 = vld [vmem:[%s312 + $0x1] sm:$0xff]
        %v386 = vld [vmem:[%s312 + $0x9] sm:$0xff]
        %v387 = vld [vmem:[%s312 + $0x11] sm:$0xf]
        %v388 = vstv %s384
        %v389 = vmul.f32 %v388, %v385
        %v390 = vmul.f32 %v388, %v386
        %v391 = vmul.f32 %v388, %v387
        %v392 = vadd.f32 %v381, %v389
        %v393 = vadd.f32 %v382, %v390
        %v394 = vadd.f32 %v383, %v391
        %v395 = vld [vmem:[#allocation2] sm:$0xff]
        %v396 = vld [vmem:[#allocation2 + $0x8] sm:$0xff]
        %v397 = vld [vmem:[#allocation2 + $0x10] sm:$0xf]
        %v398 = vld [vmem:[#allocation2 + $0x1] sm:$0xff]
        %v399 = vld [vmem:[#allocation2 + $0x9] sm:$0xff]
        %v400 = vld [vmem:[#allocation2 + $0x11] sm:$0xf]
        %v401 = vld [vmem:[#allocation2 + $0x2] sm:$0xff]
        %v402 = vld [vmem:[#allocation2 + $0xa] sm:$0xff]
        %v403 = vld [vmem:[#allocation2 + $0x12] sm:$0xf]
        %s404 = sld [smem:[#allocation7]]
        %v405 = vstv %s404
        %v406 = vmul.f32 %v405, %v395
        %v407 = vmul.f32 %v405, %v396
        %v408 = vmul.f32 %v405, %v397
        %s409 = sld [smem:[#allocation7 + $0x3]]
        %v410 = vstv %s409
        %v411 = vmul.f32 %v410, %v398
        %v412 = vmul.f32 %v410, %v399
        %v413 = vmul.f32 %v410, %v400
        %v414 = vadd.f32 %v406, %v411
        %v415 = vadd.f32 %v407, %v412
        %v416 = vadd.f32 %v408, %v413
        %s417 = sld [smem:[#allocation7 + $0x6]]
        %v418 = vstv %s417
        %v419 = vmul.f32 %v418, %v401
        %v420 = vmul.f32 %v418, %v402
        %v421 = vmul.f32 %v418, %v403
        %v422 = vadd.f32 %v414, %v419
        %v423 = vadd.f32 %v415, %v420
        %v424 = vadd.f32 %v416, %v421
        %s425 = sld [smem:[#allocation7 + $0x1]]
        %v426 = vstv %s425
        %v427 = vmul.f32 %v426, %v395
        %v428 = vmul.f32 %v426, %v396
        %v429 = vmul.f32 %v426, %v397
        %s430 = sld [smem:[#allocation7 + $0x4]]
        %v431 = vstv %s430
        %v432 = vmul.f32 %v431, %v398
        %v433 = vmul.f32 %v431, %v399
        %v434 = vmul.f32 %v431, %v400
        %v435 = vadd.f32 %v427, %v432
        %v436 = vadd.f32 %v428, %v433
        %v437 = vadd.f32 %v429, %v434
        %s438 = sld [smem:[#allocation7 + $0x7]]
        %v439 = vstv %s438
        %v440 = vmul.f32 %v439, %v401
        %v441 = vmul.f32 %v439, %v402
        %v442 = vmul.f32 %v439, %v403
        %v443 = vadd.f32 %v435, %v440
        %v444 = vadd.f32 %v436, %v441
        %v445 = vadd.f32 %v437, %v442
        %s446 = sld [smem:[#allocation7 + $0x2]]
        %v447 = vstv %s446
        %v448 = vmul.f32 %v447, %v395
        %v449 = vmul.f32 %v447, %v396
        %v450 = vmul.f32 %v447, %v397
        %s451 = sld [smem:[#allocation7 + $0x5]]
        %v452 = vstv %s451
        %v453 = vmul.f32 %v452, %v398
        %v454 = vmul.f32 %v452, %v399
        %v455 = vmul.f32 %v452, %v400
        %v456 = vadd.f32 %v448, %v453
        %v457 = vadd.f32 %v449, %v454
        %v458 = vadd.f32 %v450, %v455
        %s459 = sld [smem:[#allocation7 + $0x8]]
        %v460 = vstv %s459
        %v461 = vmul.f32 %v460, %v401
        %v462 = vmul.f32 %v460, %v402
        %v463 = vmul.f32 %v460, %v403
        %v464 = vadd.f32 %v456, %v461
        %v465 = vadd.f32 %v457, %v462
        %v466 = vadd.f32 %v458, %v463
        %467 = vrot.lane.b32.xlu0 %v443, 127
        %v468 = vpop.permute.xlu0 %467
        %469 = vrot.lane.b32.xlu0 %v444, 127
        %v470 = vpop.permute.xlu0 %469
        %471 = vrot.lane.b32.xlu0 %v445, 127
        %v472 = vpop.permute.xlu0 %471
        %v473 = vadd.f32 %v422, %v468
        %v474 = vadd.f32 %v423, %v470
        %v475 = vadd.f32 %v424, %v472
        %476 = vrot.lane.b32.xlu0 %v464, 126
        %v477 = vpop.permute.xlu0 %476
        %478 = vrot.lane.b32.xlu0 %v465, 126
        %v479 = vpop.permute.xlu0 %478
        %480 = vrot.lane.b32.xlu0 %v466, 126
        %v481 = vpop.permute.xlu0 %480
        %v482 = vadd.f32 %v473, %v477
        %v483 = vadd.f32 %v474, %v479
        %v484 = vadd.f32 %v475, %v481
        %485 = vrot.lane.b32.xlu0 %v392, 127
        %v486 = vpop.permute.xlu0 %485
        %487 = vrot.lane.b32.xlu0 %v393, 127
        %v488 = vpop.permute.xlu0 %487
        %489 = vrot.lane.b32.xlu0 %v394, 127
        %v490 = vpop.permute.xlu0 %489
        %v491 = vadd.f32 %v482, %v486
        %v492 = vadd.f32 %v483, %v488
        %v493 = vadd.f32 %v484, %v490
        %v494 = vstv %s278
        %v495 = vadd.f32 %v491, %v494
        %v496 = vadd.f32 %v492, %v494
        %v497 = vadd.f32 %v493, %v494
        %v498 = vtanh.pop %v495
        %v499 = vtanh.pop %v496
        %v500 = vtanh.pop %v497
        %501 = vst [vmem:[%s276] sm:$0xff] %v498
        %502 = vst [vmem:[%s276 + $0x8] sm:$0xff] %v499
        %503 = vst [vmem:[%s276 + $0x10] sm:$0xf] %v500
        %p504 = scmp.lt.s32.totalorder %s19, 1
        %s505 = scalar_select %p504, %s19, 1
        %s506 = smul.addr %s505, 3
        %s507 = smul.addr %s506, 8
        %s508 = scalar_lea.vmem %s5, %s507
        // Predicated region
        $region57: #{_model_tanh_forward.1} parent=39 // pred_check
          %p509 = pneg %p147
        $region58: #{_model_tanh_forward.1} parent=39 // pred_check_branch
          %511 = sbr.rel (%p509) target = $region60
        $region59: #{_model_tanh_forward.1} parent=39 // pred_region
          _
        $region60: #{_model_tanh_forward.1} parent=39 // pred_fallthru
          _
      $region40: #{_model_tanh_forward.1} parent=5 // pred_fallthru
        _
      %p512 = scmp.le.s32.totalorder 2, %s14
      // Predicated region
      $region61: #{_model_tanh_forward.1} parent=5 // pred_check
        %p513 = pneg %p512
      $region62: #{_model_tanh_forward.1} parent=5 // pred_check_branch
        %515 = sbr.rel (%p513) target = $region64
      $region63: #{_model_tanh_forward.1} parent=5 // pred_region
        %s516 = ssub.s32 %s14, 2
        // Predicated region
        $region65: #{_model_tanh_forward.1} parent=63 // pred_check
          %p517 = pneg %p153
        $region66: #{_model_tanh_forward.1} parent=63 // pred_check_branch
          %519 = sbr.rel (%p517) target = $region68
        $region67: #{_model_tanh_forward.1} parent=63 // pred_region
          %p520 = scmp.lt.s32.totalorder %s20, 1
          %s521 = scalar_select %p520, %s20, 1
          %s522 = smul.addr %s521, 3
          %s523 = smul.addr %s522, 8
          %s524 = scalar_lea.vmem %s5, %s523
        $region68: #{_model_tanh_forward.1} parent=63 // pred_fallthru
          _
      $region64: #{_model_tanh_forward.1} parent=5 // pred_fallthru
        _
    $region6: #{_model_tanh_forward.1} parent=1 // loop_footer
      %s18 = sadd.s32 1, %s14
    $region7: #{_model_tanh_forward.1} parent=1 // loop_footer_branch
      %13 = sbr.rel target = $region3
    $region8: #{_model_tanh_forward.1} parent=1 // loop_exit
      _
    %525 = vsyncpa [#allocation4], 1
    %s526 = scalar_lea.sflag [#allocation4], 1
    %527 = vsyncpa %s526, 1
    %528 = vsyncpa [#allocation6], 1
    %529 = vsyncpa [#allocation9], 1

</llo_original>
